<compile_context>
chip_gen: v7x
topology: tpu7x:2x2x1
jax: 0.10.0
libtpu: 0.0.40
codegen_flags: <defaults>
</compile_context>

<pallas_src>
import math

import jax
import jax.numpy as jnp
from jax.experimental import pallas as pl
from jax.experimental.pallas import tpu as pltpu

NUM_LATENT = 4
NUM_PARAMS = 2           # len(problem['input_parameters'])
SPACE_DIM = 2            # problem['space']['dimension']
NUM_OUT_FIELDS = 1       # len(problem['output_fields'])

DYN_IN = NUM_LATENT + NUM_PARAMS          # 6
DYN_HID = 6
DYN_OUT = NUM_LATENT * 2                  # 8
REC_IN = NUM_LATENT + SPACE_DIM           # 6
REC_HID = 9
REC_OUT = NUM_OUT_FIELDS                  # 1

# Packed layer table AFTER fusing dyn's last Linear (6->8, truncated to 6) with
# rec's first Linear (6->9):  Wf = W_rec1 @ W_dyn3[:6],  bf = W_rec1 @ b_dyn3[:6] + b_rec1.
# Entries are (row offset in the packed blocks, out_features, in_features);
# offsets are 8-aligned so static sublane slices start on vreg tile boundaries.
_LAYERS = (
    (0,  DYN_HID, DYN_IN),    # dyn Linear(6->6)                     -> tanh
    (8,  DYN_HID, DYN_HID),   # dyn Linear(6->6)                     -> tanh
    (16, REC_HID, REC_IN),    # fused dyn Linear(6->8)[:6] o rec(6->9) -> tanh
    (32, REC_HID, REC_HID),   # rec Linear(9->9)                     -> tanh
    (48, REC_OUT, REC_HID),   # rec Linear(9->1)
)
PACK_ROWS = 56
PACK_COLS = REC_HID           # 9 == max in_features

_MATMUL_DTYPE = jnp.bfloat16  # MXU operand dtype (accumulation stays f32)

_MACS_PER_SAMPLE = sum(o * i for _, o, i in _LAYERS)        # 216
_TANH_PER_SAMPLE = sum(o for _, o, _ in _LAYERS[:-1])       # 30
_BYTES_PER_SAMPLE = (DYN_IN + REC_OUT) * 4                  # 28


def _mlp_chain_kernel(x_ref, w_ref, b_ref, o_ref):
    """Fused dyn->rec MLP chain for one lane-axis batch tile.

    x_ref: (DYN_IN, tile) f32 — features on sublanes, batch on lanes.
    w_ref: (PACK_ROWS, PACK_COLS) f32 packed (out, in) weights.
    b_ref: (PACK_ROWS, 1) f32 packed biases (lane-broadcast against activations).
    o_ref: (REC_OUT, tile) f32 lane-dense output row.
    """

    def dense(act, layer):
        r0, out_d, in_d = _LAYERS[layer]
        # bf16 operands -> native MXU path on every generation; f32 accumulate.
        w = w_ref[r0:r0 + out_d, 0:in_d].astype(_MATMUL_DTYPE)   # static slice
        b = b_ref[r0:r0 + out_d, 0:1]                            # (out_d, 1) f32
        y = jnp.dot(w, act.astype(_MATMUL_DTYPE),
                    preferred_element_type=jnp.float32)
        return y + b                                             # bias in f32

    x = x_ref[...]                                # (DYN_IN, tile) f32

    h = jnp.tanh(dense(x, 0))                     # dyn layer 1
    h = jnp.tanh(dense(h, 1))                     # dyn layer 2
    h = jnp.tanh(dense(h, 2))                     # fused dyn3[:6] o rec1
    h = jnp.tanh(dense(h, 3))                     # rec layer 2
    o_ref[...] = dense(h, 4).astype(o_ref.dtype)  # rec layer 3


def _round_up(a, b):
    return ((a + b - 1) // b) * b


def pack_params(params):
    """Fuse dyn[-1] with rec[0] and pack the 5 layers into one W block + one b block."""
    (w1, b1, w2, b2, w3, b3, w4, b4, w5, b5, w6, b6) = params
    # TODO(synk): truncate the dyn output to the 6 features rec consumes (see header).
    w3t = w3[:REC_IN].astype(jnp.float32)                 # (6, 6)
    b3t = b3[:REC_IN].astype(jnp.float32)                 # (6,)
    # Exact algebraic fusion (no nonlinearity between the two Linears).
    wf = w4.astype(jnp.float32) @ w3t                     # (9, 6)
    bf = w4.astype(jnp.float32) @ b3t + b4.astype(jnp.float32)  # (9,)

    ws = (w1, w2, wf, w5, w6)
    bs = (b1, b2, bf, b5, b6)
    w_pack = jnp.zeros((PACK_ROWS, PACK_COLS), jnp.float32)
    b_pack = jnp.zeros((PACK_ROWS, 1), jnp.float32)
    for (r0, out_d, in_d), w, b in zip(_LAYERS, ws, bs):
        w_pack = w_pack.at[r0:r0 + out_d, :in_d].set(w.astype(jnp.float32))
        b_pack = b_pack.at[r0:r0 + out_d, 0].set(b.astype(jnp.float32))
    return w_pack, b_pack


def nn_forward_feature_major(x_fm, params, *, tile_n=8192):
    """Primary entry point.  x_fm: (6, N) float32 -> (N, 1) float32.

    Feature-major input avoids any wrapper-side transpose/pad HBM passes.
    """
    f, n = x_fm.shape
    if f != DYN_IN:
        raise ValueError(f"expected ({DYN_IN}, N) feature-major input, got {x_fm.shape}")

    w_pack, b_pack = pack_params(params)

    # Large lane tile (amortizes per-step overhead), but keep the grid >= 2 steps
    # when possible so v7x's two TensorCores both get work.
    tile = max(128, min(_round_up(tile_n, 128), _round_up(pl.cdiv(n, 2), 128)))
    grid = (pl.cdiv(n, tile),)   # ragged tail handled by Pallas masking

    cost = pl.CostEstimate(
        flops=2 * _MACS_PER_SAMPLE * n,
        transcendentals=_TANH_PER_SAMPLE * n,
        bytes_accessed=_BYTES_PER_SAMPLE * n + 4 * PACK_ROWS * (PACK_COLS + 1),
    )

    out = pl.pallas_call(
        _mlp_chain_kernel,
        out_shape=jax.ShapeDtypeStruct((REC_OUT, n), jnp.float32),
        grid_spec=pltpu.PrefetchScalarGridSpec(
            num_scalar_prefetch=0,
            grid=grid,
            in_specs=[
                pl.BlockSpec((DYN_IN, tile), lambda i: (0, i)),
                pl.BlockSpec((PACK_ROWS, PACK_COLS), lambda i: (0, 0)),
                pl.BlockSpec((PACK_ROWS, 1), lambda i: (0, 0)),
            ],
            out_specs=pl.BlockSpec((REC_OUT, tile), lambda i: (0, i)),
        ),
        compiler_params=pltpu.CompilerParams(
            dimension_semantics=("parallel",)),
        cost_estimate=cost,
    )(x_fm.astype(jnp.float32), w_pack, b_pack)

    # (1, N) -> (N, 1); trivial layout change (REC_OUT == 1).
    return jnp.transpose(out)


def nn_forward(x, params, *, tile_n=8192):
    """Convenience wrapper for row-major input.  x: (N, 6) -> (N, 1).

    NOTE: pays one extra HBM pass for the transpose; prefer the (6, N) layout
    via nn_forward_feature_major on the hot path.
    """
    return nn_forward_feature_major(jnp.transpose(x), params, tile_n=tile_n)


def init_params(key):
    """PyTorch nn.Linear-style init: W, b ~ U(-1/sqrt(fan_in), +1/sqrt(fan_in)).

    Weights are (out_features, in_features) (PyTorch layout), biases (out,).
    """
    layer_dims = [
        (DYN_HID, DYN_IN), (DYN_HID, DYN_HID), (DYN_OUT, DYN_HID),
        (REC_HID, REC_IN), (REC_HID, REC_HID), (REC_OUT, REC_HID),
    ]
    params = []
    keys = jax.random.split(key, 2 * len(layer_dims))
    for idx, (out_d, in_d) in enumerate(layer_dims):
        bound = 1.0 / math.sqrt(in_d)
        w = jax.random.uniform(keys[2 * idx], (out_d, in_d), jnp.float32,
                               -bound, bound)
        b = jax.random.uniform(keys[2 * idx + 1], (out_d,), jnp.float32,
                               -bound, bound)
        params += [w, b]
    return tuple(params)


def reference_forward(x, params):
    """Pure-JAX f32 reference matching the kernel's (truncated) forward semantics."""
    (w1, b1, w2, b2, w3, b3, w4, b4, w5, b5, w6, b6) = params
    h = jnp.tanh(x @ w1.T + b1)
    h = jnp.tanh(h @ w2.T + b2)
    x_ds = h @ w3.T + b3
    r = x_ds[:, :REC_IN]           # TODO(synk): see header note
    h = jnp.tanh(r @ w4.T + b4)
    h = jnp.tanh(h @ w5.T + b5)
    return h @ w6.T + b6


if __name__ == "__main__":
    key = jax.random.PRNGKey(0)
    k_param, k_x1, k_x2 = jax.random.split(key, 3)

    params = init_params(k_param)

    # sindy_coef_{i} parameters exist in __init__ (library_dim x 4 each) but are
    # unused in forward(); they are intentionally omitted from the kernel.

    # Feature-major hot path: (6, N).  N=1000 -> tile=512, grid=2 (exercises the
    # multi-step grid and the masked ragged tail block).
    n1 = 1000
    x_fm = jax.random.normal(k_x1, (DYN_IN, n1), jnp.float32)
    out1 = jax.block_until_ready(nn_forward_feature_major(x_fm, params))
    ref1 = reference_forward(jnp.transpose(x_fm), params)
    assert out1.shape == (n1, REC_OUT)
    # bf16 matmul operands (f32 accumulate) -> loosened tolerance vs the f32 reference.
    assert jnp.allclose(out1, ref1, atol=5e-2, rtol=5e-2), "mismatch vs JAX reference"

    # Row-major convenience path (small ragged batch).
    n2 = 200
    x_nm = jax.random.normal(k_x2, (n2, DYN_IN), jnp.float32)
    out2 = jax.block_until_ready(nn_forward(x_nm, params))
    assert out2.shape == (n2, REC_OUT)
    assert jnp.allclose(out2, reference_forward(x_nm, params),
                        atol=5e-2, rtol=5e-2), "mismatch vs reference (row-major path)"

    print("KERNEL_OK")
</pallas_src>

<mosaic_0001>
module attributes {stable_mosaic.version = 11 : i64} {
  func.func @_mlp_chain_kernel(%arg0: i32, %arg1: memref<6x512xf32, #tpu.memory_space<vmem>>, %arg2: memref<56x9xf32, #tpu.memory_space<vmem>>, %arg3: memref<56x1xf32, #tpu.memory_space<vmem>>, %arg4: memref<1x512xf32, #tpu.memory_space<vmem>>) attributes {dimension_semantics = [#tpu.dimension_semantics<parallel>], iteration_bounds = array<i64: 2>, scalar_prefetch = 0 : i64, scratch_operands = 0 : i64, tpu.core_type = #tpu.core_type<tc>, window_params = [{transform_indices = @transform_0, window_bounds = array<i64: 6, 512>}, {pipeline_mode = #tpu.pipeline_mode<synchronous>, transform_indices = @transform_1, window_bounds = array<i64: 56, 9>}, {pipeline_mode = #tpu.pipeline_mode<synchronous>, transform_indices = @transform_2, window_bounds = array<i64: 56, 1>}, {transform_indices = @transform_3, window_bounds = array<i64: 1, 512>}]} {
    %c0 = arith.constant 0 : index
    %c0_0 = arith.constant 0 : index
    %0 = vector.load %arg1[%c0, %c0_0] : memref<6x512xf32, #tpu.memory_space<vmem>>, vector<6x512xf32>
    %c0_1 = arith.constant 0 : index
    %c0_2 = arith.constant 0 : index
    %1 = vector.load %arg2[%c0_1, %c0_2] : memref<56x9xf32, #tpu.memory_space<vmem>>, vector<6x6xf32>
    %2 = arith.truncf %1 : vector<6x6xf32> to vector<6x6xbf16>
    %c0_3 = arith.constant 0 : index
    %c0_4 = arith.constant 0 : index
    %3 = vector.load %arg3[%c0_3, %c0_4] : memref<56x1xf32, #tpu.memory_space<vmem>>, vector<6x1xf32>
    %4 = arith.truncf %0 : vector<6x512xf32> to vector<6x512xbf16>
    %cst = arith.constant dense<0.000000e+00> : vector<6x512xf32>
    %5 = tpu.matmul %2, %4, %cst {dimension_numbers = #tpu.dot_dimension_numbers<[1], [0], [0], [1], [0, 0, 1, 1], [], []>} : vector<6x6xbf16>, vector<6x512xbf16>, vector<6x512xf32> -> vector<6x512xf32>
    %6 = vector.broadcast %3 : vector<6x1xf32> to vector<6x512xf32>
    %7 = arith.addf %5, %6 : vector<6x512xf32>
    %8 = math.tanh %7 : vector<6x512xf32>
    %c8 = arith.constant 8 : index
    %c0_5 = arith.constant 0 : index
    %9 = vector.load %arg2[%c8, %c0_5] : memref<56x9xf32, #tpu.memory_space<vmem>>, vector<6x6xf32>
    %10 = arith.truncf %9 : vector<6x6xf32> to vector<6x6xbf16>
    %c8_6 = arith.constant 8 : index
    %c0_7 = arith.constant 0 : index
    %11 = vector.load %arg3[%c8_6, %c0_7] : memref<56x1xf32, #tpu.memory_space<vmem>>, vector<6x1xf32>
    %12 = arith.truncf %8 : vector<6x512xf32> to vector<6x512xbf16>
    %cst_8 = arith.constant dense<0.000000e+00> : vector<6x512xf32>
    %13 = tpu.matmul %10, %12, %cst_8 {dimension_numbers = #tpu.dot_dimension_numbers<[1], [0], [0], [1], [0, 0, 1, 1], [], []>} : vector<6x6xbf16>, vector<6x512xbf16>, vector<6x512xf32> -> vector<6x512xf32>
    %14 = vector.broadcast %11 : vector<6x1xf32> to vector<6x512xf32>
    %15 = arith.addf %13, %14 : vector<6x512xf32>
    %16 = math.tanh %15 : vector<6x512xf32>
    %c16 = arith.constant 16 : index
    %c0_9 = arith.constant 0 : index
    %17 = vector.load %arg2[%c16, %c0_9] : memref<56x9xf32, #tpu.memory_space<vmem>>, vector<9x6xf32>
    %18 = arith.truncf %17 : vector<9x6xf32> to vector<9x6xbf16>
    %c16_10 = arith.constant 16 : index
    %c0_11 = arith.constant 0 : index
    %19 = vector.load %arg3[%c16_10, %c0_11] : memref<56x1xf32, #tpu.memory_space<vmem>>, vector<9x1xf32>
    %20 = arith.truncf %16 : vector<6x512xf32> to vector<6x512xbf16>
    %cst_12 = arith.constant dense<0.000000e+00> : vector<9x512xf32>
    %21 = tpu.matmul %18, %20, %cst_12 {dimension_numbers = #tpu.dot_dimension_numbers<[1], [0], [0], [1], [0, 0, 1, 1], [], []>} : vector<9x6xbf16>, vector<6x512xbf16>, vector<9x512xf32> -> vector<9x512xf32>
    %22 = vector.broadcast %19 : vector<9x1xf32> to vector<9x512xf32>
    %23 = arith.addf %21, %22 : vector<9x512xf32>
    %24 = math.tanh %23 : vector<9x512xf32>
    %c32 = arith.constant 32 : index
    %c0_13 = arith.constant 0 : index
    %25 = vector.load %arg2[%c32, %c0_13] : memref<56x9xf32, #tpu.memory_space<vmem>>, vector<9x9xf32>
    %26 = arith.truncf %25 : vector<9x9xf32> to vector<9x9xbf16>
    %c32_14 = arith.constant 32 : index
    %c0_15 = arith.constant 0 : index
    %27 = vector.load %arg3[%c32_14, %c0_15] : memref<56x1xf32, #tpu.memory_space<vmem>>, vector<9x1xf32>
    %28 = arith.truncf %24 : vector<9x512xf32> to vector<9x512xbf16>
    %cst_16 = arith.constant dense<0.000000e+00> : vector<9x512xf32>
    %29 = tpu.matmul %26, %28, %cst_16 {dimension_numbers = #tpu.dot_dimension_numbers<[1], [0], [0], [1], [0, 0, 1, 1], [], []>} : vector<9x9xbf16>, vector<9x512xbf16>, vector<9x512xf32> -> vector<9x512xf32>
    %30 = vector.broadcast %27 : vector<9x1xf32> to vector<9x512xf32>
    %31 = arith.addf %29, %30 : vector<9x512xf32>
    %32 = math.tanh %31 : vector<9x512xf32>
    %c48 = arith.constant 48 : index
    %c0_17 = arith.constant 0 : index
    %33 = vector.load %arg2[%c48, %c0_17] : memref<56x9xf32, #tpu.memory_space<vmem>>, vector<1x9xf32>
    %34 = arith.truncf %33 : vector<1x9xf32> to vector<1x9xbf16>
    %c48_18 = arith.constant 48 : index
    %c0_19 = arith.constant 0 : index
    %35 = vector.load %arg3[%c48_18, %c0_19] : memref<56x1xf32, #tpu.memory_space<vmem>>, vector<1x1xf32>
    %36 = arith.truncf %32 : vector<9x512xf32> to vector<9x512xbf16>
    %cst_20 = arith.constant dense<0.000000e+00> : vector<1x512xf32>
    %37 = tpu.matmul %34, %36, %cst_20 {dimension_numbers = #tpu.dot_dimension_numbers<[1], [0], [0], [1], [0, 0, 1, 1], [], []>} : vector<1x9xbf16>, vector<9x512xbf16>, vector<1x512xf32> -> vector<1x512xf32>
    %38 = vector.broadcast %35 : vector<1x1xf32> to vector<1x512xf32>
    %39 = arith.addf %37, %38 : vector<1x512xf32>
    %c0_21 = arith.constant 0 : index
    %c0_22 = arith.constant 0 : index
    %40 = vector.load %arg4[%c0_21, %c0_22] : memref<1x512xf32, #tpu.memory_space<vmem>>, vector<1x512xf32>
    tpu.vector_store %arg4[%c0_21, %c0_22], %39 {strides = array<i32>} : memref<1x512xf32, #tpu.memory_space<vmem>>, vector<1x512xf32>,
    return
  }
  func.func @transform_0(%arg0: i32) -> (i32, i32) {
    %c0_i32 = arith.constant 0 : i32
    %c0_i32_0 = arith.constant 0 : i32
    return %c0_i32, %arg0 : i32, i32
  }
  func.func @transform_1(%arg0: i32) -> (i32, i32) {
    %c0_i32 = arith.constant 0 : i32
    %c0_i32_0 = arith.constant 0 : i32
    %c0_i32_1 = arith.constant 0 : i32
    return %c0_i32, %c0_i32_0 : i32, i32
  }
  func.func @transform_2(%arg0: i32) -> (i32, i32) {
    %c0_i32 = arith.constant 0 : i32
    %c0_i32_0 = arith.constant 0 : i32
    %c0_i32_1 = arith.constant 0 : i32
    return %c0_i32, %c0_i32_0 : i32, i32
  }
  func.func @transform_3(%arg0: i32) -> (i32, i32) {
    %c0_i32 = arith.constant 0 : i32
    %c0_i32_0 = arith.constant 0 : i32
    return %c0_i32, %arg0 : i32, i32
  }
}

</mosaic_0001>

<llo_original>
// kernel: tpu_custom_call.1
$region0: #{tpu_custom_call.1}
  #allocation0 [shape = 'u32[]', space=smem, size = 0x4, offset = 0x4, fixed_abs, tag = 'smem constant byte address 0x4 - core index']
  #allocation1 [shape = 'u32[144,128]{1,0:T(1,128)}', space=vmem, size = 0x12000, scoped, tag = 'internal scratch']
  %s0 = inlined_call_operand.vmem [shape: f32[6,1000], index: 0, kind: input, shape index: {}]
  %s1 = inlined_call_operand.vmem [shape: f32[56,9], index: 1, kind: input, shape index: {}]
  %s2 = inlined_call_operand.vmem [shape: f32[56,1], index: 2, kind: input, shape index: {}]
  %s3 = inlined_call_operand.hbm [shape: f32[1,1000], index: 3, kind: output, shape index: {}]
  %s4 = sld [smem:[#allocation0]]
  $region45: #{tpu_custom_call.1} parent=0
    _
  %s6 = ssub.s32 1, %s4
  %s7 = scalar_select 0, %s6, %s4
  $region1: #{tpu_custom_call.1} parent=0
    #allocation2 [shape = 'u8[4096]{0}', space=vmem, size = 0x1000, scoped, tag = 'output window, operand 0']
    #allocation3 [shape = 's32[2]{0}', space=sflag, size = 0x8, scoped, tag = 'scoped memory for tpu_custom_call.1']
    %8 = vsyncpa [#allocation3], 0
    %s9 = scalar_lea.sflag [#allocation3], 1
    %10 = vsyncpa %s9, 0
    loop: start=0, step=1, limit=4
    $region2: #{tpu_custom_call.1} parent=1 // loop_pre_header
      _
    $region3: #{tpu_custom_call.1} parent=1 // loop_header
      %s12 = sphi 0, %s16
      %p13 = scmp.ge.s32.totalorder %s12, 4
      %s22 = sphi 0, %s24
      %s25 = sphi 0, %s22
      %s26 = sphi 0, %s25
      %s42 = sphi 0, %s26
      %s46 = sphi 0, %s46
      %s48 = sphi 0, %s46
      %s49 = sphi 0, %s48
      %s63 = sphi 0, %s49
      %s67 = sphi 0, %s67
      %s69 = sphi 0, %s67
      %s70 = sphi 0, %s69
      %s84 = sphi 0, %s70
      %s90 = sphi 0, %s92
      %s93 = sphi 0, %s90
      %s94 = sphi 0, %s93
      %s110 = sphi 0, %s94
    $region4: #{tpu_custom_call.1} parent=1 // loop_header_branch
      %15 = sbr.rel (%p13) target = $region8
    $region5: #{tpu_custom_call.1} parent=1 // loop_body
      %s17 = ssub.s32 %s12, 1
      %s18 = ssub.s32 %s12, 2
      %s19 = sadd.s32 %s12, 1
      %s20 = ssub.s32 %s12, %s19
      %p21 = scmp.eq.s32.totalorder %s20, 0
      %s23 = sadd.s32 %s22, 1
      %s24 = scalar_select %p21, %s22, %s23
      %p27 = pneg %p21
      %p28 = scmp.eq.s32.totalorder %s12, 1
      %p29 = por %p27, %p28
      %p30 = scmp.ne.s32.totalorder %s22, %s25
      %p31 = scmp.eq.s32.totalorder %s12, 0
      %p32 = por %p30, %p31
      %p33 = scmp.ne.s32.totalorder %s22, %s25
      %p34 = scmp.eq.s32.totalorder %s17, 1
      %p35 = por %p33, %p34
      %p36 = scmp.ne.s32.totalorder %s25, %s26
      %p37 = scmp.eq.s32.totalorder %s17, 0
      %p38 = por %p36, %p37
      %p39 = scmp.ne.s32.totalorder %s25, %s26
      %p40 = scmp.eq.s32.totalorder %s18, 1
      %p41 = por %p39, %p40
      %p43 = scmp.ne.s32.totalorder %s26, %s42
      %p44 = scmp.eq.s32.totalorder %s18, 0
      %p45 = por %p43, %p44
      %s47 = sadd.s32 %s46, 1
      %p50 = scmp.eq.s32.totalorder %s12, 1
      %p51 = scmp.ne.s32.totalorder %s46, %s48
      %p52 = scmp.eq.s32.totalorder %s12, 0
      %p53 = por %p51, %p52
      %p54 = scmp.ne.s32.totalorder %s46, %s48
      %p55 = scmp.eq.s32.totalorder %s17, 1
      %p56 = por %p54, %p55
      %p57 = scmp.ne.s32.totalorder %s48, %s49
      %p58 = scmp.eq.s32.totalorder %s17, 0
      %p59 = por %p57, %p58
      %p60 = scmp.ne.s32.totalorder %s48, %s49
      %p61 = scmp.eq.s32.totalorder %s18, 1
      %p62 = por %p60, %p61
      %p64 = scmp.ne.s32.totalorder %s49, %s63
      %p65 = scmp.eq.s32.totalorder %s18, 0
      %p66 = por %p64, %p65
      %s68 = sadd.s32 %s67, 1
      %p71 = scmp.eq.s32.totalorder %s12, 1
      %p72 = scmp.ne.s32.totalorder %s67, %s69
      %p73 = scmp.eq.s32.totalorder %s12, 0
      %p74 = por %p72, %p73
      %p75 = scmp.ne.s32.totalorder %s67, %s69
      %p76 = scmp.eq.s32.totalorder %s17, 1
      %p77 = por %p75, %p76
      %p78 = scmp.ne.s32.totalorder %s69, %s70
      %p79 = scmp.eq.s32.totalorder %s17, 0
      %p80 = por %p78, %p79
      %p81 = scmp.ne.s32.totalorder %s69, %s70
      %p82 = scmp.eq.s32.totalorder %s18, 1
      %p83 = por %p81, %p82
      %p85 = scmp.ne.s32.totalorder %s70, %s84
      %p86 = scmp.eq.s32.totalorder %s18, 0
      %p87 = por %p85, %p86
      %s88 = ssub.s32 %s12, %s19
      %p89 = scmp.eq.s32.totalorder %s88, 0
      %s91 = sadd.s32 %s90, 1
      %s92 = scalar_select %p89, %s90, %s91
      %p95 = pneg %p89
      %p96 = scmp.eq.s32.totalorder %s12, 1
      %p97 = por %p95, %p96
      %p98 = scmp.ne.s32.totalorder %s90, %s93
      %p99 = scmp.eq.s32.totalorder %s12, 0
      %p100 = por %p98, %p99
      %p101 = scmp.ne.s32.totalorder %s90, %s93
      %p102 = scmp.eq.s32.totalorder %s17, 1
      %p103 = por %p101, %p102
      %p104 = scmp.ne.s32.totalorder %s93, %s94
      %p105 = scmp.eq.s32.totalorder %s17, 0
      %p106 = por %p104, %p105
      %p107 = scmp.ne.s32.totalorder %s93, %s94
      %p108 = scmp.eq.s32.totalorder %s18, 1
      %p109 = por %p107, %p108
      %p111 = scmp.ne.s32.totalorder %s94, %s110
      %p112 = scmp.eq.s32.totalorder %s18, 0
      %p113 = por %p111, %p112
      %p114 = scmp.le.s32.totalorder 1, %s12
      %p115 = scmp.lt.s32.totalorder %s12, 3
      %p116 = pnand %p114, %p115
      %p117 = pneg %p116
      // Predicated region
      $region9: #{tpu_custom_call.1} parent=5 // pred_check
        _
      $region10: #{tpu_custom_call.1} parent=5 // pred_check_branch
        %119 = sbr.rel (%p116) target = $region12
      $region11: #{tpu_custom_call.1} parent=5 // pred_region
        %s120 = ssub.s32 %s12, 1
        // Predicated region
        $region13: #{tpu_custom_call.1} parent=11 // pred_check
          %p121 = pneg %p59
        $region14: #{tpu_custom_call.1} parent=11 // pred_check_branch
          %123 = sbr.rel (%p121) target = $region16
        $region15: #{tpu_custom_call.1} parent=11 // pred_region
          _
        $region16: #{tpu_custom_call.1} parent=11 // pred_fallthru
          _
        // Predicated region
        $region17: #{tpu_custom_call.1} parent=11 // pred_check
          %p124 = pneg %p80
        $region18: #{tpu_custom_call.1} parent=11 // pred_check_branch
          %126 = sbr.rel (%p124) target = $region20
        $region19: #{tpu_custom_call.1} parent=11 // pred_region
          _
        $region20: #{tpu_custom_call.1} parent=11 // pred_fallthru
          _
      $region12: #{tpu_custom_call.1} parent=5 // pred_fallthru
        _
      %p127 = scmp.lt.s32.totalorder %s12, 2
      // Predicated region
      $region21: #{tpu_custom_call.1} parent=5 // pred_check
        %p128 = pneg %p127
      $region22: #{tpu_custom_call.1} parent=5 // pred_check_branch
        %130 = sbr.rel (%p128) target = $region24
      $region23: #{tpu_custom_call.1} parent=5 // pred_region
        // Predicated region
        $region25: #{tpu_custom_call.1} parent=23 // pred_check
          %p131 = pneg %p32
        $region26: #{tpu_custom_call.1} parent=23 // pred_check_branch
          %133 = sbr.rel (%p131) target = $region28
        $region27: #{tpu_custom_call.1} parent=23 // pred_region
          %s134 = smul.u32 4, %s12
          %p135 = scmp.lt.s32.totalorder %s134, 7
          %s136 = scalar_select %p135, %s134, 7
          %s137 = smul.addr %s136, 8
          %s138 = scalar_lea.vmem %s0, %s137
          %s139 = smul.u32 4, %s12
        $region28: #{tpu_custom_call.1} parent=23 // pred_fallthru
          _
      $region24: #{tpu_custom_call.1} parent=5 // pred_fallthru
        _
      %p140 = scmp.le.s32.totalorder 1, %s12
      %p141 = scmp.lt.s32.totalorder %s12, 3
      %p142 = pnand %p140, %p141
      %p143 = pneg %p142
      // Predicated region
      $region29: #{tpu_custom_call.1} parent=5 // pred_check
        _
      $region30: #{tpu_custom_call.1} parent=5 // pred_check_branch
        %145 = sbr.rel (%p142) target = $region32
      $region31: #{tpu_custom_call.1} parent=5 // pred_region
        %s146 = ssub.s32 %s12, 1
        %s147 = smul.u32 4, %s17
        %p148 = scmp.lt.s32.totalorder %s147, 7
        %s149 = scalar_select %p148, %s147, 7
        %s150 = smul.addr %s149, 8
        %s151 = scalar_lea.vmem %s0, %s150
        %p152 = pneg %p38
        %p153 = pneg %p35
        %p154 = pneg %p59
        %p155 = pneg %p56
        %p156 = pneg %p80
        %p157 = pneg %p77
        %p158 = pneg %p106
        %p159 = pneg %p103
        %s160 = sand.u32 %s93, 1
        %s161 = scalar_lea.sflag [#allocation3], %s160
        %s162 = sand.u32 %s93, 1
        %s163 = smul.addr %s162, 4
        %s164 = scalar_lea.vmem [#allocation2], %s163
        %s165 = smul.u32 4, %s17
        %p166 = scmp.lt.s32.totalorder %s165, 7
        %s167 = scalar_select %p166, %s165, 7
        %s168 = smul.addr %s167, 8
        %s169 = scalar_lea.vmem %s0, %s168
        %s170 = smul.u32 4, %s17
        %s171 = smul.u32 4, %s17
        %v173 = vld [vmem:[%s169] sm:$0x3f]
        %v174 = vld [vmem:[%s169 + $0x8] sm:$0x3f]
        %v175 = vld [vmem:[%s169 + $0x10] sm:$0x3f]
        %v176 = vld [vmem:[%s169 + $0x18] sm:$0x3f]
        %v177 = vld [vmem:[%s1] sm:$0x3f]
        %v178 = vpack.c.bf16 %v177, %v177
        %v179 = vld [vmem:[%s2] sm:$0x3f]
        %v180 = vpack.c.bf16 %v173, %v173
        %v181 = vpack.c.bf16 %v174, %v174
        %v182 = vpack.c.bf16 %v175, %v175
        %v183 = vpack.c.bf16 %v176, %v176
        %185 = vset.pattern.permute.xlu0 0
        %186 = vperm.xlu0 %185, %v179
        %v187 = vpop.permute.xlu0 %186
        %vm189 = vcmask 48128
        %v191 = vsel %vm189, %v178, 0
        %vm193 = vcmask 1042432
        %v195 = vsel %vm193, %v180, 0
        %v198 = vsel %vm193, %v181, 0
        %v201 = vsel %vm193, %v182, 0
        %v204 = vsel %vm193, %v183, 0
        %206 = vmatprep.subr.bf16.mxu0 %v198
        %207 = vmatpush1.bf16.msra.mxu0 %v195
        %208 = vmatprep.subr.bf16.mxu0 0
        %209 = vmatpush1.bf16.msra.mxu0 0
        %210 = vmatprep.subr.bf16.mxu0 0
        %211 = vmatpush1.bf16.msra.mxu0 0
        %212 = vmatprep.subr.bf16.mxu0 0
        %213 = vmatpush1.bf16.msra.mxu0 0
        %214 = vmatprep.subr.bf16.mxu0 0
        %215 = vmatpush1.bf16.msra.mxu0 0
        %216 = vmatprep.subr.bf16.mxu0 0
        %217 = vmatpush1.bf16.msra.mxu0 0
        %218 = vmatprep.subr.bf16.mxu0 0
        %219 = vmatpush1.bf16.msra.mxu0 0
        %220 = vmatprep.subr.bf16.mxu0 0
        %221 = vmatpush1.bf16.msra.mxu0 0
        %222 = vmatprep.subr.bf16.mxu0 0
        %223 = vmatpush1.bf16.msra.mxu0 0
        %224 = vmatprep.subr.bf16.mxu0 0
        %225 = vmatpush1.bf16.msra.mxu0 0
        %226 = vmatprep.subr.bf16.mxu0 0
        %227 = vmatpush1.bf16.msra.mxu0 0
        %228 = vmatprep.subr.bf16.mxu0 0
        %229 = vmatpush1.bf16.msra.mxu0 0
        %230 = vmatprep.subr.bf16.mxu0 0
        %231 = vmatpush1.bf16.msra.mxu0 0
        %232 = vmatprep.subr.bf16.mxu0 0
        %233 = vmatpush1.bf16.msra.mxu0 0
        %234 = vmatprep.subr.bf16.mxu0 0
        %235 = vmatpush1.bf16.msra.mxu0 0
        %236 = vmatprep.subr.bf16.mxu0 0
        %237 = vmatpush1.bf16.msra.mxu0 0
        %238 = vmatprep.mubr.bf16.mxu0 0
        %239 = vmatmul.mubr.bf16.gmra.mrb[0].mxu0 %v191
        %v240 = vpop.f32.mrb[0].mxu0
        %v241 = vadd.f32 %v187, %v240
        %v242 = vpop.f32.mrb[0].mxu0
        %v243 = vadd.f32 %v187, %v242
        %v244 = vpop.f32.mrb[0].mxu0
        %v245 = vpop.f32.mrb[0].mxu0
        %246 = vdwg.mxu0
        %247 = vmatprep.subr.bf16.mxu0 %v204
        %248 = vmatpush1.bf16.msra.mxu0 %v201
        %249 = vmatprep.subr.bf16.mxu0 0
        %250 = vmatpush1.bf16.msra.mxu0 0
        %251 = vmatprep.subr.bf16.mxu0 0
        %252 = vmatpush1.bf16.msra.mxu0 0
        %253 = vmatprep.subr.bf16.mxu0 0
        %254 = vmatpush1.bf16.msra.mxu0 0
        %255 = vmatprep.subr.bf16.mxu0 0
        %256 = vmatpush1.bf16.msra.mxu0 0
        %257 = vmatprep.subr.bf16.mxu0 0
        %258 = vmatpush1.bf16.msra.mxu0 0
        %259 = vmatprep.subr.bf16.mxu0 0
        %260 = vmatpush1.bf16.msra.mxu0 0
        %261 = vmatprep.subr.bf16.mxu0 0
        %262 = vmatpush1.bf16.msra.mxu0 0
        %263 = vmatprep.subr.bf16.mxu0 0
        %264 = vmatpush1.bf16.msra.mxu0 0
        %265 = vmatprep.subr.bf16.mxu0 0
        %266 = vmatpush1.bf16.msra.mxu0 0
        %267 = vmatprep.subr.bf16.mxu0 0
        %268 = vmatpush1.bf16.msra.mxu0 0
        %269 = vmatprep.subr.bf16.mxu0 0
        %270 = vmatpush1.bf16.msra.mxu0 0
        %271 = vmatprep.subr.bf16.mxu0 0
        %272 = vmatpush1.bf16.msra.mxu0 0
        %273 = vmatprep.subr.bf16.mxu0 0
        %274 = vmatpush1.bf16.msra.mxu0 0
        %275 = vmatprep.subr.bf16.mxu0 0
        %276 = vmatpush1.bf16.msra.mxu0 0
        %277 = vmatprep.subr.bf16.mxu0 0
        %278 = vmatpush1.bf16.msra.mxu0 0
        %279 = vmatprep.mubr.bf16.mxu0 0
        %280 = vmatmul.mubr.bf16.gmra.mrb[0].mxu0 %v191
        %v281 = vpop.f32.mrb[0].mxu0
        %v282 = vadd.f32 %v187, %v281
        %v283 = vpop.f32.mrb[0].mxu0
        %v284 = vadd.f32 %v187, %v283
        %v285 = vpop.f32.mrb[0].mxu0
        %v286 = vpop.f32.mrb[0].mxu0
        %287 = vdwg.mxu0
        %v288 = vtanh.pop %v241
        %v289 = vtanh.pop %v243
        %v290 = vtanh.pop %v282
        %v291 = vtanh.pop %v284
        %v292 = vld [vmem:[%s1 + $0x8] sm:$0x3f]
        %v293 = vpack.c.bf16 %v292, %v292
        %v294 = vld [vmem:[%s2 + $0x8] sm:$0x3f]
        %v295 = vpack.c.bf16 %v288, %v288
        %v296 = vpack.c.bf16 %v289, %v289
        %v297 = vpack.c.bf16 %v290, %v290
        %v298 = vpack.c.bf16 %v291, %v291
        %300 = vset.pattern.permute.xlu0 0
        %301 = vperm.xlu0 %300, %v294
        %v302 = vpop.permute.xlu0 %301
        %v305 = vsel %vm189, %v293, 0
        %v308 = vsel %vm193, %v295, 0
        %v311 = vsel %vm193, %v296, 0
        %v314 = vsel %vm193, %v297, 0
        %v317 = vsel %vm193, %v298, 0
        %319 = vmatprep.subr.bf16.mxu0 %v311
        %320 = vmatpush1.bf16.msra.mxu0 %v308
        %321 = vmatprep.subr.bf16.mxu0 0
        %322 = vmatpush1.bf16.msra.mxu0 0
        %323 = vmatprep.subr.bf16.mxu0 0
        %324 = vmatpush1.bf16.msra.mxu0 0
        %325 = vmatprep.subr.bf16.mxu0 0
        %326 = vmatpush1.bf16.msra.mxu0 0
        %327 = vmatprep.subr.bf16.mxu0 0
        %328 = vmatpush1.bf16.msra.mxu0 0
        %329 = vmatprep.subr.bf16.mxu0 0
        %330 = vmatpush1.bf16.msra.mxu0 0
        %331 = vmatprep.subr.bf16.mxu0 0
        %332 = vmatpush1.bf16.msra.mxu0 0
        %333 = vmatprep.subr.bf16.mxu0 0
        %334 = vmatpush1.bf16.msra.mxu0 0
        %335 = vmatprep.subr.bf16.mxu0 0
        %336 = vmatpush1.bf16.msra.mxu0 0
        %337 = vmatprep.subr.bf16.mxu0 0
        %338 = vmatpush1.bf16.msra.mxu0 0
        %339 = vmatprep.subr.bf16.mxu0 0
        %340 = vmatpush1.bf16.msra.mxu0 0
        %341 = vmatprep.subr.bf16.mxu0 0
        %342 = vmatpush1.bf16.msra.mxu0 0
        %343 = vmatprep.subr.bf16.mxu0 0
        %344 = vmatpush1.bf16.msra.mxu0 0
        %345 = vmatprep.subr.bf16.mxu0 0
        %346 = vmatpush1.bf16.msra.mxu0 0
        %347 = vmatprep.subr.bf16.mxu0 0
        %348 = vmatpush1.bf16.msra.mxu0 0
        %349 = vmatprep.subr.bf16.mxu0 0
        %350 = vmatpush1.bf16.msra.mxu0 0
        %351 = vmatprep.mubr.bf16.mxu0 0
        %352 = vmatmul.mubr.bf16.gmra.mrb[0].mxu0 %v305
        %v353 = vpop.f32.mrb[0].mxu0
        %v354 = vadd.f32 %v302, %v353
        %v355 = vpop.f32.mrb[0].mxu0
        %v356 = vadd.f32 %v302, %v355
        %v357 = vpop.f32.mrb[0].mxu0
        %v358 = vpop.f32.mrb[0].mxu0
        %359 = vdwg.mxu0
        %360 = vmatprep.subr.bf16.mxu0 %v317
        %361 = vmatpush1.bf16.msra.mxu0 %v314
        %362 = vmatprep.subr.bf16.mxu0 0
        %363 = vmatpush1.bf16.msra.mxu0 0
        %364 = vmatprep.subr.bf16.mxu0 0
        %365 = vmatpush1.bf16.msra.mxu0 0
        %366 = vmatprep.subr.bf16.mxu0 0
        %367 = vmatpush1.bf16.msra.mxu0 0
        %368 = vmatprep.subr.bf16.mxu0 0
        %369 = vmatpush1.bf16.msra.mxu0 0
        %370 = vmatprep.subr.bf16.mxu0 0
        %371 = vmatpush1.bf16.msra.mxu0 0
        %372 = vmatprep.subr.bf16.mxu0 0
        %373 = vmatpush1.bf16.msra.mxu0 0
        %374 = vmatprep.subr.bf16.mxu0 0
        %375 = vmatpush1.bf16.msra.mxu0 0
        %376 = vmatprep.subr.bf16.mxu0 0
        %377 = vmatpush1.bf16.msra.mxu0 0
        %378 = vmatprep.subr.bf16.mxu0 0
        %379 = vmatpush1.bf16.msra.mxu0 0
        %380 = vmatprep.subr.bf16.mxu0 0
        %381 = vmatpush1.bf16.msra.mxu0 0
        %382 = vmatprep.subr.bf16.mxu0 0
        %383 = vmatpush1.bf16.msra.mxu0 0
        %384 = vmatprep.subr.bf16.mxu0 0
        %385 = vmatpush1.bf16.msra.mxu0 0
        %386 = vmatprep.subr.bf16.mxu0 0
        %387 = vmatpush1.bf16.msra.mxu0 0
        %388 = vmatprep.subr.bf16.mxu0 0
        %389 = vmatpush1.bf16.msra.mxu0 0
        %390 = vmatprep.subr.bf16.mxu0 0
        %391 = vmatpush1.bf16.msra.mxu0 0
        %392 = vmatprep.mubr.bf16.mxu0 0
        %393 = vmatmul.mubr.bf16.gmra.mrb[0].mxu0 %v305
        %v394 = vpop.f32.mrb[0].mxu0
        %v395 = vadd.f32 %v302, %v394
        %v396 = vpop.f32.mrb[0].mxu0
        %v397 = vadd.f32 %v302, %v396
        %v398 = vpop.f32.mrb[0].mxu0
        %v399 = vpop.f32.mrb[0].mxu0
        %400 = vdwg.mxu0
        %v401 = vtanh.pop %v354
        %v402 = vtanh.pop %v356
        %v403 = vtanh.pop %v395
        %v404 = vtanh.pop %v397
        %v405 = vld [vmem:[%s1 + $0x10] sm:$0xff]
        %v406 = vld [vmem:[%s1 + $0x18] sm:$0x1]
        %v407 = vpack.c.bf16 %v406, %v405
        %v408 = vld [vmem:[%s2 + $0x10] sm:$0xff]
        %v409 = vld [vmem:[%s2 + $0x18] sm:$0x1]
        %v410 = vpack.c.bf16 %v401, %v401
        %v411 = vpack.c.bf16 %v402, %v402
        %v412 = vpack.c.bf16 %v403, %v403
        %v413 = vpack.c.bf16 %v404, %v404
        %415 = vset.pattern.permute.xlu0 0
        %416 = vperm.xlu0 %415, %v408
        %v417 = vpop.permute.xlu0 %416
        %420 = vset.pattern.permute.xlu0 0
        %421 = vperm.xlu0 %420, %v409
        %v422 = vpop.permute.xlu0 %421
        %v425 = vsel %vm189, %v407, 0
        %v428 = vsel %vm193, %v410, 0
        %v431 = vsel %vm193, %v411, 0
        %v434 = vsel %vm193, %v412, 0
        %v437 = vsel %vm193, %v413, 0
        %439 = vmatprep.subr.bf16.mxu0 %v431
        %440 = vmatpush1.bf16.msra.mxu0 %v428
        %441 = vmatprep.subr.bf16.mxu0 0
        %442 = vmatpush1.bf16.msra.mxu0 0
        %443 = vmatprep.subr.bf16.mxu0 0
        %444 = vmatpush1.bf16.msra.mxu0 0
        %445 = vmatprep.subr.bf16.mxu0 0
        %446 = vmatpush1.bf16.msra.mxu0 0
        %447 = vmatprep.subr.bf16.mxu0 0
        %448 = vmatpush1.bf16.msra.mxu0 0
        %449 = vmatprep.subr.bf16.mxu0 0
        %450 = vmatpush1.bf16.msra.mxu0 0
        %451 = vmatprep.subr.bf16.mxu0 0
        %452 = vmatpush1.bf16.msra.mxu0 0
        %453 = vmatprep.subr.bf16.mxu0 0
        %454 = vmatpush1.bf16.msra.mxu0 0
        %455 = vmatprep.subr.bf16.mxu0 0
        %456 = vmatpush1.bf16.msra.mxu0 0
        %457 = vmatprep.subr.bf16.mxu0 0
        %458 = vmatpush1.bf16.msra.mxu0 0
        %459 = vmatprep.subr.bf16.mxu0 0
        %460 = vmatpush1.bf16.msra.mxu0 0
        %461 = vmatprep.subr.bf16.mxu0 0
        %462 = vmatpush1.bf16.msra.mxu0 0
        %463 = vmatprep.subr.bf16.mxu0 0
        %464 = vmatpush1.bf16.msra.mxu0 0
        %465 = vmatprep.subr.bf16.mxu0 0
        %466 = vmatpush1.bf16.msra.mxu0 0
        %467 = vmatprep.subr.bf16.mxu0 0
        %468 = vmatpush1.bf16.msra.mxu0 0
        %469 = vmatprep.subr.bf16.mxu0 0
        %470 = vmatpush1.bf16.msra.mxu0 0
        %471 = vmatprep.mubr.bf16.mxu0 0
        %472 = vmatmul.mubr.bf16.gmra.mrb[0].mxu0 %v425
        %v473 = vpop.f32.mrb[0].mxu0
        %v474 = vadd.f32 %v417, %v473
        %v475 = vpop.f32.mrb[0].mxu0
        %v476 = vadd.f32 %v417, %v475
        %v477 = vpop.f32.mrb[0].mxu0
        %v478 = vadd.f32 %v422, %v477
        %v479 = vpop.f32.mrb[0].mxu0
        %v480 = vadd.f32 %v422, %v479
        %481 = vdwg.mxu0
        %482 = vmatprep.subr.bf16.mxu0 %v437
        %483 = vmatpush1.bf16.msra.mxu0 %v434
        %484 = vmatprep.subr.bf16.mxu0 0
        %485 = vmatpush1.bf16.msra.mxu0 0
        %486 = vmatprep.subr.bf16.mxu0 0
        %487 = vmatpush1.bf16.msra.mxu0 0
        %488 = vmatprep.subr.bf16.mxu0 0
        %489 = vmatpush1.bf16.msra.mxu0 0
        %490 = vmatprep.subr.bf16.mxu0 0
        %491 = vmatpush1.bf16.msra.mxu0 0
        %492 = vmatprep.subr.bf16.mxu0 0
        %493 = vmatpush1.bf16.msra.mxu0 0
        %494 = vmatprep.subr.bf16.mxu0 0
        %495 = vmatpush1.bf16.msra.mxu0 0
        %496 = vmatprep.subr.bf16.mxu0 0
        %497 = vmatpush1.bf16.msra.mxu0 0
        %498 = vmatprep.subr.bf16.mxu0 0
        %499 = vmatpush1.bf16.msra.mxu0 0
        %500 = vmatprep.subr.bf16.mxu0 0
        %501 = vmatpush1.bf16.msra.mxu0 0
        %502 = vmatprep.subr.bf16.mxu0 0
        %503 = vmatpush1.bf16.msra.mxu0 0
        %504 = vmatprep.subr.bf16.mxu0 0
        %505 = vmatpush1.bf16.msra.mxu0 0
        %506 = vmatprep.subr.bf16.mxu0 0
        %507 = vmatpush1.bf16.msra.mxu0 0
        %508 = vmatprep.subr.bf16.mxu0 0
        %509 = vmatpush1.bf16.msra.mxu0 0
        %510 = vmatprep.subr.bf16.mxu0 0
        %511 = vmatpush1.bf16.msra.mxu0 0
        %512 = vmatprep.subr.bf16.mxu0 0
        %513 = vmatpush1.bf16.msra.mxu0 0
        %514 = vmatprep.mubr.bf16.mxu0 0
        %515 = vmatmul.mubr.bf16.gmra.mrb[0].mxu0 %v425
        %v516 = vpop.f32.mrb[0].mxu0
        %v517 = vadd.f32 %v417, %v516
        %v518 = vpop.f32.mrb[0].mxu0
        %v519 = vadd.f32 %v417, %v518
        %v520 = vpop.f32.mrb[0].mxu0
        %v521 = vadd.f32 %v422, %v520
        %v522 = vpop.f32.mrb[0].mxu0
        %v523 = vadd.f32 %v422, %v522
        %524 = vdwg.mxu0
        %v525 = vtanh.pop %v474
        %v526 = vtanh.pop %v476
        %v527 = vtanh.pop %v517
        %v528 = vtanh.pop %v519
        %v529 = vtanh.pop %v478
        %v530 = vtanh.pop %v480
        %v531 = vtanh.pop %v521
        %v532 = vtanh.pop %v523
        %v533 = vld [vmem:[%s1 + $0x20] sm:$0xff]
        %v534 = vld [vmem:[%s1 + $0x28] sm:$0x1]
        %v535 = vpack.c.bf16 %v534, %v533
        %v536 = vld [vmem:[%s2 + $0x20] sm:$0xff]
        %v537 = vld [vmem:[%s2 + $0x28] sm:$0x1]
        %v538 = vpack.c.bf16 %v529, %v525
        %v539 = vpack.c.bf16 %v530, %v526
        %v540 = vpack.c.bf16 %v531, %v527
        %v541 = vpack.c.bf16 %v532, %v528
        %543 = vset.pattern.permute.xlu0 0
        %544 = vperm.xlu0 %543, %v536
        %v545 = vpop.permute.xlu0 %544
        %548 = vset.pattern.permute.xlu0 0
        %549 = vperm.xlu0 %548, %v537
        %v550 = vpop.permute.xlu0 %549
        %vm552 = vcmask 72704
        %v554 = vsel %vm552, %v535, 0
        %vm556 = vcmask 1043456
        %vm557 = vcmask 1044480
        %v558 = vsel %vm556, 4294967295, 65535
        %v559 = vsel %vm557, %v558, 0
        %v561 = vand.u32 %v538, %v559
        %v564 = vand.u32 %v539, %v559
        %v567 = vand.u32 %v540, %v559
        %v570 = vand.u32 %v541, %v559
        %572 = vmatprep.subr.bf16.mxu0 %v564
        %573 = vmatpush1.bf16.msra.mxu0 %v561
        %574 = vmatprep.subr.bf16.mxu0 0
        %575 = vmatpush1.bf16.msra.mxu0 0
        %576 = vmatprep.subr.bf16.mxu0 0
        %577 = vmatpush1.bf16.msra.mxu0 0
        %578 = vmatprep.subr.bf16.mxu0 0
        %579 = vmatpush1.bf16.msra.mxu0 0
        %580 = vmatprep.subr.bf16.mxu0 0
        %581 = vmatpush1.bf16.msra.mxu0 0
        %582 = vmatprep.subr.bf16.mxu0 0
        %583 = vmatpush1.bf16.msra.mxu0 0
        %584 = vmatprep.subr.bf16.mxu0 0
        %585 = vmatpush1.bf16.msra.mxu0 0
        %586 = vmatprep.subr.bf16.mxu0 0
        %587 = vmatpush1.bf16.msra.mxu0 0
        %588 = vmatprep.subr.bf16.mxu0 0
        %589 = vmatpush1.bf16.msra.mxu0 0
        %590 = vmatprep.subr.bf16.mxu0 0
        %591 = vmatpush1.bf16.msra.mxu0 0
        %592 = vmatprep.subr.bf16.mxu0 0
        %593 = vmatpush1.bf16.msra.mxu0 0
        %594 = vmatprep.subr.bf16.mxu0 0
        %595 = vmatpush1.bf16.msra.mxu0 0
        %596 = vmatprep.subr.bf16.mxu0 0
        %597 = vmatpush1.bf16.msra.mxu0 0
        %598 = vmatprep.subr.bf16.mxu0 0
        %599 = vmatpush1.bf16.msra.mxu0 0
        %600 = vmatprep.subr.bf16.mxu0 0
        %601 = vmatpush1.bf16.msra.mxu0 0
        %602 = vmatprep.subr.bf16.mxu0 0
        %603 = vmatpush1.bf16.msra.mxu0 0
        %604 = vmatprep.mubr.bf16.mxu0 0
        %605 = vmatmul.mubr.bf16.gmra.mrb[0].mxu0 %v554
        %v606 = vpop.f32.mrb[0].mxu0
        %v607 = vadd.f32 %v545, %v606
        %v608 = vpop.f32.mrb[0].mxu0
        %v609 = vadd.f32 %v545, %v608
        %v610 = vpop.f32.mrb[0].mxu0
        %v611 = vadd.f32 %v550, %v610
        %v612 = vpop.f32.mrb[0].mxu0
        %v613 = vadd.f32 %v550, %v612
        %614 = vdwg.mxu0
        %615 = vmatprep.subr.bf16.mxu0 %v570
        %616 = vmatpush1.bf16.msra.mxu0 %v567
        %617 = vmatprep.subr.bf16.mxu0 0
        %618 = vmatpush1.bf16.msra.mxu0 0
        %619 = vmatprep.subr.bf16.mxu0 0
        %620 = vmatpush1.bf16.msra.mxu0 0
        %621 = vmatprep.subr.bf16.mxu0 0
        %622 = vmatpush1.bf16.msra.mxu0 0
        %623 = vmatprep.subr.bf16.mxu0 0
        %624 = vmatpush1.bf16.msra.mxu0 0
        %625 = vmatprep.subr.bf16.mxu0 0
        %626 = vmatpush1.bf16.msra.mxu0 0
        %627 = vmatprep.subr.bf16.mxu0 0
        %628 = vmatpush1.bf16.msra.mxu0 0
        %629 = vmatprep.subr.bf16.mxu0 0
        %630 = vmatpush1.bf16.msra.mxu0 0
        %631 = vmatprep.subr.bf16.mxu0 0
        %632 = vmatpush1.bf16.msra.mxu0 0
        %633 = vmatprep.subr.bf16.mxu0 0
        %634 = vmatpush1.bf16.msra.mxu0 0
        %635 = vmatprep.subr.bf16.mxu0 0
        %636 = vmatpush1.bf16.msra.mxu0 0
        %637 = vmatprep.subr.bf16.mxu0 0
        %638 = vmatpush1.bf16.msra.mxu0 0
        %639 = vmatprep.subr.bf16.mxu0 0
        %640 = vmatpush1.bf16.msra.mxu0 0
        %641 = vmatprep.subr.bf16.mxu0 0
        %642 = vmatpush1.bf16.msra.mxu0 0
        %643 = vmatprep.subr.bf16.mxu0 0
        %644 = vmatpush1.bf16.msra.mxu0 0
        %645 = vmatprep.subr.bf16.mxu0 0
        %646 = vmatpush1.bf16.msra.mxu0 0
        %647 = vmatprep.mubr.bf16.mxu0 0
        %648 = vmatmul.mubr.bf16.gmra.mrb[0].mxu0 %v554
        %v649 = vpop.f32.mrb[0].mxu0
        %v650 = vadd.f32 %v545, %v649
        %v651 = vpop.f32.mrb[0].mxu0
        %v652 = vadd.f32 %v545, %v651
        %v653 = vpop.f32.mrb[0].mxu0
        %v654 = vadd.f32 %v550, %v653
        %v655 = vpop.f32.mrb[0].mxu0
        %v656 = vadd.f32 %v550, %v655
        %657 = vdwg.mxu0
        %v658 = vtanh.pop %v607
        %v659 = vtanh.pop %v609
        %v660 = vtanh.pop %v650
        %v661 = vtanh.pop %v652
        %v662 = vtanh.pop %v611
        %v663 = vtanh.pop %v613
        %v664 = vtanh.pop %v654
        %v665 = vtanh.pop %v656
        %v666 = vld [vmem:[%s1 + $0x30] sm:$0x1]
        %v667 = vpack.c.bf16 %v666, %v666
        %v668 = vld [vmem:[%s2 + $0x30] sm:$0x1]
        %v669 = vpack.c.bf16 %v662, %v658
        %v670 = vpack.c.bf16 %v663, %v659
        %v671 = vpack.c.bf16 %v664, %v660
        %v672 = vpack.c.bf16 %v665, %v661
        %674 = vset.pattern.permute.xlu0 0
        %675 = vperm.xlu0 %674, %v668
        %v676 = vpop.permute.xlu0 %675
        %v679 = vsel %vm552, %v667, 0
        %v682 = vand.u32 %v669, %v559
        %v685 = vand.u32 %v670, %v559
        %v688 = vand.u32 %v671, %v559
        %v691 = vand.u32 %v672, %v559
        %693 = vmatprep.subr.bf16.mxu0 %v685
        %694 = vmatpush1.bf16.msra.mxu0 %v682
        %695 = vmatprep.subr.bf16.mxu0 0
        %696 = vmatpush1.bf16.msra.mxu0 0
        %697 = vmatprep.subr.bf16.mxu0 0
        %698 = vmatpush1.bf16.msra.mxu0 0
        %699 = vmatprep.subr.bf16.mxu0 0
        %700 = vmatpush1.bf16.msra.mxu0 0
        %701 = vmatprep.subr.bf16.mxu0 0
        %702 = vmatpush1.bf16.msra.mxu0 0
        %703 = vmatprep.subr.bf16.mxu0 0
        %704 = vmatpush1.bf16.msra.mxu0 0
        %705 = vmatprep.subr.bf16.mxu0 0
        %706 = vmatpush1.bf16.msra.mxu0 0
        %707 = vmatprep.subr.bf16.mxu0 0
        %708 = vmatpush1.bf16.msra.mxu0 0
        %709 = vmatprep.subr.bf16.mxu0 0
        %710 = vmatpush1.bf16.msra.mxu0 0
        %711 = vmatprep.subr.bf16.mxu0 0
        %712 = vmatpush1.bf16.msra.mxu0 0
        %713 = vmatprep.subr.bf16.mxu0 0
        %714 = vmatpush1.bf16.msra.mxu0 0
        %715 = vmatprep.subr.bf16.mxu0 0
        %716 = vmatpush1.bf16.msra.mxu0 0
        %717 = vmatprep.subr.bf16.mxu0 0
        %718 = vmatpush1.bf16.msra.mxu0 0
        %719 = vmatprep.subr.bf16.mxu0 0
        %720 = vmatpush1.bf16.msra.mxu0 0
        %721 = vmatprep.subr.bf16.mxu0 0
        %722 = vmatpush1.bf16.msra.mxu0 0
        %723 = vmatprep.subr.bf16.mxu0 0
        %724 = vmatpush1.bf16.msra.mxu0 0
        %725 = vmatprep.mubr.bf16.mxu0 0
        %726 = vmatmul.mubr.bf16.gmra.mrb[0].mxu0 %v679
        %v727 = vpop.f32.mrb[0].mxu0
        %v728 = vadd.f32 %v676, %v727
        %v729 = vpop.f32.mrb[0].mxu0
        %v730 = vadd.f32 %v676, %v729
        %v731 = vpop.f32.mrb[0].mxu0
        %v732 = vpop.f32.mrb[0].mxu0
        %733 = vdwg.mxu0
        %734 = vmatprep.subr.bf16.mxu0 %v691
        %735 = vmatpush1.bf16.msra.mxu0 %v688
        %736 = vmatprep.subr.bf16.mxu0 0
        %737 = vmatpush1.bf16.msra.mxu0 0
        %738 = vmatprep.subr.bf16.mxu0 0
        %739 = vmatpush1.bf16.msra.mxu0 0
        %740 = vmatprep.subr.bf16.mxu0 0
        %741 = vmatpush1.bf16.msra.mxu0 0
        %742 = vmatprep.subr.bf16.mxu0 0
        %743 = vmatpush1.bf16.msra.mxu0 0
        %744 = vmatprep.subr.bf16.mxu0 0
        %745 = vmatpush1.bf16.msra.mxu0 0
        %746 = vmatprep.subr.bf16.mxu0 0
        %747 = vmatpush1.bf16.msra.mxu0 0
        %748 = vmatprep.subr.bf16.mxu0 0
        %749 = vmatpush1.bf16.msra.mxu0 0
        %750 = vmatprep.subr.bf16.mxu0 0
        %751 = vmatpush1.bf16.msra.mxu0 0
        %752 = vmatprep.subr.bf16.mxu0 0
        %753 = vmatpush1.bf16.msra.mxu0 0
        %754 = vmatprep.subr.bf16.mxu0 0
        %755 = vmatpush1.bf16.msra.mxu0 0
        %756 = vmatprep.subr.bf16.mxu0 0
        %757 = vmatpush1.bf16.msra.mxu0 0
        %758 = vmatprep.subr.bf16.mxu0 0
        %759 = vmatpush1.bf16.msra.mxu0 0
        %760 = vmatprep.subr.bf16.mxu0 0
        %761 = vmatpush1.bf16.msra.mxu0 0
        %762 = vmatprep.subr.bf16.mxu0 0
        %763 = vmatpush1.bf16.msra.mxu0 0
        %764 = vmatprep.subr.bf16.mxu0 0
        %765 = vmatpush1.bf16.msra.mxu0 0
        %766 = vmatprep.mubr.bf16.mxu0 0
        %767 = vmatmul.mubr.bf16.gmra.mrb[0].mxu0 %v679
        %v768 = vpop.f32.mrb[0].mxu0
        %v769 = vadd.f32 %v676, %v768
        %v770 = vpop.f32.mrb[0].mxu0
        %v771 = vadd.f32 %v676, %v770
        %v772 = vpop.f32.mrb[0].mxu0
        %v773 = vpop.f32.mrb[0].mxu0
        %774 = vdwg.mxu0
        %v779 = vcombine.low %v728, %v730
        %v780 = vcombine.low %v769, %v771
        %v782 = vunpack.c.l.s4 1966171168
        %v783 = vunpack.c.0.s8 %v782
        %v784 = vlaneseq
        %v785 = vshrl.u32 %v784, 7
        %v786 = vsub.s32 %v783, %v785
        %v787 = vrot.slane %v779, %v786
        %v789 = vunpack.c.l.s4 1966171168
        %v790 = vunpack.c.0.s8 %v789
        %v791 = vlaneseq
        %v792 = vshrl.u32 %v791, 7
        %v793 = vsub.s32 %v790, %v792
        %v794 = vrot.slane %v780, %v793
        %v795 = vcombine.low %v787, %v794
        %v797 = vunpack.c.l.s4 1966171168
        %v798 = vunpack.c.0.s8 %v797
        %v799 = vlaneseq
        %v800 = vshrl.u32 %v799, 7
        %v801 = vsub.s32 %v798, %v800
        %v802 = vrot.slane %v795, %v801
        %v804 = vlaneseq
        %vm805 = vcmp.ge.s32.totalorder %v804, 0
        %vm806 = vcmp.lt.s32.totalorder %v804, 512
        %vm807 = vmand %vm805, %vm806
        %808 = vst.msk [vmem:[%s164] sm:$0xf] %vm807, %v802
        %s809 = sand.u32 %s93, 1
        %s810 = scalar_lea.sflag [#allocation3], %s809
        %s811 = sand.u32 %s93, 1
        %s812 = smul.addr %s811, 4
        %s813 = scalar_lea.vmem [#allocation2], %s812
        // Predicated region
        $region33: #{tpu_custom_call.1} parent=31 // pred_check
          %p814 = pneg %p103
        $region34: #{tpu_custom_call.1} parent=31 // pred_check_branch
          %816 = sbr.rel (%p814) target = $region36
        $region35: #{tpu_custom_call.1} parent=31 // pred_region
          %s817 = smul.u32 4, %s17
          %s819 = ssub.s32 64, 64
          %820 = vsyncadd %s810, %s819
          %s821 = smul.addr %s817, 16
          %s822 = scalar_lea.hbm %s3, %s821
          %s824 = sshll.u32 %s813, 4
          %s825 = int_to_ptr.vmem [resolvable:$true] %s824
          %827 = dma.vmem_to_hbm [thread:$0]  %s825, 64, %s822, %s810
        $region36: #{tpu_custom_call.1} parent=31 // pred_fallthru
          _
      $region32: #{tpu_custom_call.1} parent=5 // pred_fallthru
        _
      %p828 = scmp.le.s32.totalorder 2, %s12
      // Predicated region
      $region37: #{tpu_custom_call.1} parent=5 // pred_check
        %p829 = pneg %p828
      $region38: #{tpu_custom_call.1} parent=5 // pred_check_branch
        %831 = sbr.rel (%p829) target = $region40
      $region39: #{tpu_custom_call.1} parent=5 // pred_region
        %s832 = ssub.s32 %s12, 2
        // Predicated region
        $region41: #{tpu_custom_call.1} parent=39 // pred_check
          %p833 = pneg %p109
        $region42: #{tpu_custom_call.1} parent=39 // pred_check_branch
          %835 = sbr.rel (%p833) target = $region44
        $region43: #{tpu_custom_call.1} parent=39 // pred_region
          %s836 = sand.u32 %s94, 1
          %s837 = scalar_lea.sflag [#allocation3], %s836
          %s838 = sand.u32 %s94, 1
          %s839 = smul.addr %s838, 4
          %s840 = scalar_lea.vmem [#allocation2], %s839
          %841 = dma.done %s837, 64
        $region44: #{tpu_custom_call.1} parent=39 // pred_fallthru
          _
      $region40: #{tpu_custom_call.1} parent=5 // pred_fallthru
        _
    $region6: #{tpu_custom_call.1} parent=1 // loop_footer
      %s16 = sadd.s32 1, %s12
    $region7: #{tpu_custom_call.1} parent=1 // loop_footer_branch
      %11 = sbr.rel target = $region3
    $region8: #{tpu_custom_call.1} parent=1 // loop_exit
      _
    %842 = vsyncpa [#allocation3], 1
    %s843 = scalar_lea.sflag [#allocation3], 1
    %844 = vsyncpa %s843, 1

</llo_original>
